<compile_context>
chip_gen: v6e
topology: v6e:2x2x1
jax: 0.10.0
libtpu: 0.0.40
codegen_flags: <defaults>
</compile_context>

<pallas_src>
import functools

import jax
import jax.numpy as jnp
from jax.experimental import pallas as pl
from jax.experimental.pallas import tpu as pltpu

HIDDEN = 512                     # fixed by the PyTorch module (fc1 -> 512)
_VMEM_CAP = 48 << 20             # conservative for v7x (64 MiB physical / TC)


def _round_up(x: int, m: int) -> int:
    return ((x + m - 1) // m) * m


def _decoder_mlp_kernel(z_ref, w1_ref, b1_ref, w2_ref, b2_ref, o_ref):
    # fc1 + relu (MXU matmul, f32 accumulate).  Padded z columns / W1 rows are
    # zero so they contribute nothing.
    h = jnp.dot(z_ref[...], w1_ref[...], preferred_element_type=jnp.float32)
    h = jnp.maximum(h + b1_ref[...], 0.0)
    # fc2 + relu.  Cast h to the operand dtype (bf16-native MXU for bf16
    # params); accumulation stays f32.
    y = jnp.dot(h.astype(w2_ref.dtype), w2_ref[...],
                preferred_element_type=jnp.float32)
    o_ref[...] = jnp.maximum(y + b2_ref[...], 0.0).astype(o_ref.dtype)


def _footprint_bytes(tm, tn, zdim_p, hidden, itemsize):
    """Rough VMEM footprint: double-buffered tiles + f32 intermediates."""
    io = (tm * zdim_p                  # z tile
          + zdim_p * hidden + hidden   # W1 + b1 (resident)
          + hidden * tn + tn           # W2 + b2 block
          + tm * tn)                   # out tile
    f32_tmp = tm * hidden * 4 + tm * tn * 4   # h and fc2 accumulator
    return 2 * io * itemsize + f32_tmp + (2 << 20)   # margin for Mosaic scratch


def pad_decoder_mlp_params(w1, b1, w2, b2):
    """One-time lane-dense (multiple-of-128) padding of the weights.

    Call this at parameter-load time; the hot path then only pads z and
    slices the output back to the logical `dim`.
    Returns (w1_p, b1, w2_p, b2_p, dim) with dim = logical output width.
    """
    zdim = w1.shape[0]
    dim = w2.shape[1]
    zdim_p = _round_up(zdim, 128)
    dim_p = _round_up(dim, 128)
    if zdim_p != zdim:
        w1 = jnp.pad(w1, ((0, zdim_p - zdim), (0, 0)))
    if dim_p != dim:
        w2 = jnp.pad(w2, ((0, 0), (0, dim_p - dim)))
        b2 = jnp.pad(b2, ((0, 0), (0, dim_p - dim)))
    return w1, b1, w2, b2, dim


@functools.partial(jax.jit,
                   static_argnames=("out_dim", "block_rows", "block_cols"))
def decoder_mlp(z, w1, b1, w2, b2, *, out_dim,
                block_rows=1024, block_cols=1024):
    """relu(relu(z @ w1 + b1) @ w2 + b2).

    `w1/b1/w2/b2` must already be lane-padded (see pad_decoder_mlp_params).
    """
    n, zdim = z.shape
    zdim_p, hidden = w1.shape
    dim_p = w2.shape[1]

    # --- pad only z in the hot path ----------------------------------------
    if zdim_p != zdim:
        z = jnp.pad(z, ((0, 0), (0, zdim_p - zdim)))

    itemsize = jnp.dtype(z.dtype).itemsize
    sub = 16 if itemsize < 4 else 8          # sublane multiple per dtype

    # --- row tile: large, sublane-aligned when it does not cover the batch --
    tm = min(block_rows, n)
    if tm < n:
        tm = max(sub, (tm // sub) * sub)

    if _footprint_bytes(tm, dim_p, zdim_p, hidden, itemsize) <= _VMEM_CAP:
        # ---- Path A: single row axis; W1/b1/W2/b2 fully VMEM-resident ------
        # W2 is DMA'd from HBM exactly once; fc1 runs once per row tile.
        grid = (pl.cdiv(n, tm),)
        in_specs = [
            pl.BlockSpec((tm, zdim_p), lambda i: (i, 0)),       # z rows
            pl.BlockSpec((zdim_p, hidden), lambda i: (0, 0)),   # W1 (resident)
            pl.BlockSpec((1, hidden), lambda i: (0, 0)),        # b1
            pl.BlockSpec((hidden, dim_p), lambda i: (0, 0)),    # W2 (resident)
            pl.BlockSpec((1, dim_p), lambda i: (0, 0)),         # b2
        ]
        out_specs = pl.BlockSpec((tm, dim_p), lambda i: (i, 0))
        dim_sem = ("parallel",)
        footprint = _footprint_bytes(tm, dim_p, zdim_p, hidden, itemsize)
    else:
        # ---- Path B: columns OUTER, rows INNER ------------------------------
        # Each W2 column block is fetched exactly once (index only changes on
        # the outer axis); only the small z tile is re-read per column block.
        tn = min(_round_up(block_cols, 128), dim_p)
        while (_footprint_bytes(tm, tn, zdim_p, hidden, itemsize) > _VMEM_CAP
               and tm > sub):
            tm = max(sub, ((tm // 2) // sub) * sub)
        grid = (pl.cdiv(dim_p, tn), pl.cdiv(n, tm))
        in_specs = [
            pl.BlockSpec((tm, zdim_p), lambda j, i: (i, 0)),     # z rows
            pl.BlockSpec((zdim_p, hidden), lambda j, i: (0, 0)),  # W1
            pl.BlockSpec((1, hidden), lambda j, i: (0, 0)),       # b1
            pl.BlockSpec((hidden, tn), lambda j, i: (0, j)),      # W2 cols
            pl.BlockSpec((1, tn), lambda j, i: (0, j)),           # b2 cols
        ]
        out_specs = pl.BlockSpec((tm, tn), lambda j, i: (i, j))
        dim_sem = ("parallel", "parallel")
        footprint = _footprint_bytes(tm, tn, zdim_p, hidden, itemsize)

    vmem_limit = int(min(max(footprint, 32 << 20), _VMEM_CAP))

    out_padded = pl.pallas_call(
        _decoder_mlp_kernel,
        out_shape=jax.ShapeDtypeStruct((n, dim_p), z.dtype),
        grid_spec=pltpu.PrefetchScalarGridSpec(
            num_scalar_prefetch=0,
            grid=grid,
            in_specs=in_specs,
            out_specs=out_specs,
        ),
        compiler_params=pltpu.CompilerParams(
            dimension_semantics=dim_sem,
            vmem_limit_bytes=vmem_limit),
    )(z, w1, b1, w2, b2)

    return out_padded[:, :out_dim]


def init_decoder_mlp_params(key, zdim, dim, dtype=jnp.float32):
    """Deterministic init mirroring nn.Linear's uniform(-1/sqrt(fan_in), ...)."""
    k1, k2, k3, k4 = jax.random.split(key, 4)
    bound1 = 1.0 / jnp.sqrt(zdim)
    bound2 = 1.0 / jnp.sqrt(HIDDEN)
    w1 = jax.random.uniform(k1, (zdim, HIDDEN), dtype, -bound1, bound1)
    b1 = jax.random.uniform(k2, (1, HIDDEN), dtype, -bound1, bound1)
    w2 = jax.random.uniform(k3, (HIDDEN, dim), dtype, -bound2, bound2)
    b2 = jax.random.uniform(k4, (1, dim), dtype, -bound2, bound2)
    return w1, b1, w2, b2


if __name__ == "__main__":
    key = jax.random.PRNGKey(0)
    k_params, k_z = jax.random.split(key)

    # DecoderMLP(zdim, dim): input features = zdim, output features = dim.
    batch, zdim, dim = 8, 32, 64
    w1, b1, w2, b2 = init_decoder_mlp_params(k_params, zdim, dim)
    z = jax.random.normal(k_z, (batch, zdim), jnp.float32)

    # Pure-JAX reference.
    ref = jnp.maximum(jnp.maximum(z @ w1 + b1, 0.0) @ w2 + b2, 0.0)

    # One-time weight padding (hoisted out of the per-call hot path).
    w1p, b1p, w2p, b2p, out_dim = pad_decoder_mlp_params(w1, b1, w2, b2)

    # f32 path.
    out = jax.block_until_ready(
        decoder_mlp(z, w1p, b1p, w2p, b2p, out_dim=out_dim))
    assert out.shape == (batch, dim)
    assert jnp.allclose(out, ref, atol=1e-5, rtol=1e-5)

    # bf16 path (MXU-native; f32 accumulation inside the kernel; fc1 output is
    # cast to bf16 before fc2 -> looser tolerance is expected).
    zb = z.astype(jnp.bfloat16)
    w1b, b1b, w2b, b2b, _ = pad_decoder_mlp_params(
        *(a.astype(jnp.bfloat16) for a in (w1, b1, w2, b2)))
    out_bf16 = jax.block_until_ready(
        decoder_mlp(zb, w1b, b1b, w2b, b2b, out_dim=out_dim))
    assert out_bf16.shape == (batch, dim)
    assert jnp.allclose(out_bf16.astype(jnp.float32), ref,
                        atol=5e-2, rtol=5e-2)

    print("KERNEL_OK")
</pallas_src>

<mosaic_0001>
module attributes {stable_mosaic.version = 11 : i64} {
  func.func @_decoder_mlp_kernel(%arg0: i32, %arg1: memref<8x128xf32, #tpu.memory_space<vmem>>, %arg2: memref<128x512xf32, #tpu.memory_space<vmem>>, %arg3: memref<1x512xf32, #tpu.memory_space<vmem>>, %arg4: memref<512x128xf32, #tpu.memory_space<vmem>>, %arg5: memref<1x128xf32, #tpu.memory_space<vmem>>, %arg6: memref<8x128xf32, #tpu.memory_space<vmem>>) attributes {dimension_semantics = [#tpu.dimension_semantics<parallel>], iteration_bounds = array<i64: 1>, scalar_prefetch = 0 : i64, scratch_operands = 0 : i64, tpu.core_type = #tpu.core_type<tc>, window_params = [{transform_indices = @transform_0, window_bounds = array<i64: 8, 128>}, {pipeline_mode = #tpu.pipeline_mode<synchronous>, transform_indices = @transform_1, window_bounds = array<i64: 128, 512>}, {pipeline_mode = #tpu.pipeline_mode<synchronous>, transform_indices = @transform_2, window_bounds = array<i64: 1, 512>}, {pipeline_mode = #tpu.pipeline_mode<synchronous>, transform_indices = @transform_3, window_bounds = array<i64: 512, 128>}, {pipeline_mode = #tpu.pipeline_mode<synchronous>, transform_indices = @transform_4, window_bounds = array<i64: 1, 128>}, {transform_indices = @transform_5, window_bounds = array<i64: 8, 128>}]} {
    %c0 = arith.constant 0 : index
    %c0_0 = arith.constant 0 : index
    %0 = vector.load %arg1[%c0, %c0_0] : memref<8x128xf32, #tpu.memory_space<vmem>>, vector<8x128xf32>
    %c0_1 = arith.constant 0 : index
    %c0_2 = arith.constant 0 : index
    %1 = vector.load %arg2[%c0_1, %c0_2] : memref<128x512xf32, #tpu.memory_space<vmem>>, vector<128x512xf32>
    %cst = arith.constant dense<0.000000e+00> : vector<8x512xf32>
    %2 = tpu.matmul %0, %1, %cst {dimension_numbers = #tpu.dot_dimension_numbers<[1], [0], [0], [1], [0, 0, 1, 1], [], []>} : vector<8x128xf32>, vector<128x512xf32>, vector<8x512xf32> -> vector<8x512xf32>
    %c0_3 = arith.constant 0 : index
    %c0_4 = arith.constant 0 : index
    %3 = vector.load %arg3[%c0_3, %c0_4] : memref<1x512xf32, #tpu.memory_space<vmem>>, vector<1x512xf32>
    %4 = vector.broadcast %3 : vector<1x512xf32> to vector<8x512xf32>
    %5 = arith.addf %2, %4 : vector<8x512xf32>
    %cst_5 = arith.constant 0.000000e+00 : f32
    %6 = vector.broadcast %cst_5 : f32 to vector<8x512xf32>
    %7 = arith.maximumf %5, %6 : vector<8x512xf32>
    %c0_6 = arith.constant 0 : index
    %c0_7 = arith.constant 0 : index
    %8 = vector.load %arg4[%c0_6, %c0_7] : memref<512x128xf32, #tpu.memory_space<vmem>>, vector<512x128xf32>
    %cst_8 = arith.constant dense<0.000000e+00> : vector<8x128xf32>
    %9 = tpu.matmul %7, %8, %cst_8 {dimension_numbers = #tpu.dot_dimension_numbers<[1], [0], [0], [1], [0, 0, 1, 1], [], []>} : vector<8x512xf32>, vector<512x128xf32>, vector<8x128xf32> -> vector<8x128xf32>
    %c0_9 = arith.constant 0 : index
    %c0_10 = arith.constant 0 : index
    %10 = vector.load %arg5[%c0_9, %c0_10] : memref<1x128xf32, #tpu.memory_space<vmem>>, vector<1x128xf32>
    %11 = vector.broadcast %10 : vector<1x128xf32> to vector<8x128xf32>
    %12 = arith.addf %9, %11 : vector<8x128xf32>
    %cst_11 = arith.constant 0.000000e+00 : f32
    %13 = vector.broadcast %cst_11 : f32 to vector<8x128xf32>
    %14 = arith.maximumf %12, %13 : vector<8x128xf32>
    %c0_12 = arith.constant 0 : index
    %c0_13 = arith.constant 0 : index
    %15 = vector.load %arg6[%c0_12, %c0_13] : memref<8x128xf32, #tpu.memory_space<vmem>>, vector<8x128xf32>
    tpu.vector_store %arg6[%c0_12, %c0_13], %14 {strides = array<i32>} : memref<8x128xf32, #tpu.memory_space<vmem>>, vector<8x128xf32>,
    return
  }
  func.func @transform_0(%arg0: i32) -> (i32, i32) {
    %c0_i32 = arith.constant 0 : i32
    %c0_i32_0 = arith.constant 0 : i32
    return %arg0, %c0_i32 : i32, i32
  }
  func.func @transform_1(%arg0: i32) -> (i32, i32) {
    %c0_i32 = arith.constant 0 : i32
    %c0_i32_0 = arith.constant 0 : i32
    %c0_i32_1 = arith.constant 0 : i32
    return %c0_i32, %c0_i32_0 : i32, i32
  }
  func.func @transform_2(%arg0: i32) -> (i32, i32) {
    %c0_i32 = arith.constant 0 : i32
    %c0_i32_0 = arith.constant 0 : i32
    %c0_i32_1 = arith.constant 0 : i32
    return %c0_i32, %c0_i32_0 : i32, i32
  }
  func.func @transform_3(%arg0: i32) -> (i32, i32) {
    %c0_i32 = arith.constant 0 : i32
    %c0_i32_0 = arith.constant 0 : i32
    %c0_i32_1 = arith.constant 0 : i32
    return %c0_i32, %c0_i32_0 : i32, i32
  }
  func.func @transform_4(%arg0: i32) -> (i32, i32) {
    %c0_i32 = arith.constant 0 : i32
    %c0_i32_0 = arith.constant 0 : i32
    %c0_i32_1 = arith.constant 0 : i32
    return %c0_i32, %c0_i32_0 : i32, i32
  }
  func.func @transform_5(%arg0: i32) -> (i32, i32) {
    %c0_i32 = arith.constant 0 : i32
    %c0_i32_0 = arith.constant 0 : i32
    return %arg0, %c0_i32 : i32, i32
  }
}

</mosaic_0001>

<llo_original>
// kernel: decoder_mlp.1
$region0: #{decoder_mlp.1}
  #allocation0 [shape = 'u32[]', space=smem, size = 0x4, offset = 0x4, fixed_abs, tag = 'smem constant byte address 0x4 - core index']
  #allocation1 [shape = 'u32[144,128]{1,0:T(1,128)}', space=vmem, size = 0x12000, scoped, tag = 'internal scratch']
  %s0 = inlined_call_operand.vmem [shape: f32[8,128], index: 0, kind: input, shape index: {}]
  %s1 = inlined_call_operand.hbm [shape: f32[128,512], index: 1, kind: input, shape index: {}]
  %s2 = inlined_call_operand.vmem [shape: f32[1,512], index: 2, kind: input, shape index: {}]
  %s3 = inlined_call_operand.hbm [shape: f32[512,128], index: 3, kind: input, shape index: {}]
  %s4 = inlined_call_operand.vmem [shape: f32[1,128], index: 4, kind: input, shape index: {}]
  %s5 = inlined_call_operand.hbm [shape: f32[8,128], index: 5, kind: output, shape index: {}]
  %s6 = sld [smem:[#allocation0]]
  $region38: #{decoder_mlp.1} parent=0
    _
  %s8 = ssub.s32 1, %s6
  %s9 = scalar_select 0, %s8, %s6
  $region1: #{decoder_mlp.1} parent=0
    #allocation2 [shape = 'u8[262144]{0}', space=vmem, size = 0x40000, scoped, tag = 'input window, operand 1, single buffered']
    #allocation3 [shape = 's32[1]{0}', space=sflag, size = 0x4, scoped, tag = 'scoped memory for decoder_mlp.1']
    #allocation4 [shape = 's32[1]{0}', space=sflag, size = 0x4, scoped, tag = 'scoped memory for decoder_mlp.1']
    #allocation5 [shape = 'u8[262144]{0}', space=vmem, size = 0x40000, scoped, tag = 'input window, operand 3, single buffered']
    #allocation6 [shape = 's32[1]{0}', space=sflag, size = 0x4, scoped, tag = 'scoped memory for decoder_mlp.1']
    #allocation7 [shape = 'u8[4096]{0}', space=vmem, size = 0x1000, scoped, tag = 'output window, operand 0, single buffered']
    %10 = vsyncpa [#allocation3], 0
    %11 = vsyncpa [#allocation6], 0
    %12 = vsyncpa [#allocation4], 0
    // Predicated region
    $region2: #{decoder_mlp.1} parent=1 // pred_check
      _
    $region3: #{decoder_mlp.1} parent=1 // pred_check_branch
      %14 = sbr.rel (0) target = $region5
    $region4: #{decoder_mlp.1} parent=1 // pred_region
      _
    $region5: #{decoder_mlp.1} parent=1 // pred_fallthru
      _
    // Predicated region
    $region6: #{decoder_mlp.1} parent=1 // pred_check
      _
    $region7: #{decoder_mlp.1} parent=1 // pred_check_branch
      %16 = sbr.rel (0) target = $region9
    $region8: #{decoder_mlp.1} parent=1 // pred_region
      %s18 = ssub.s32 8192, 8192
      %19 = vsyncadd [#allocation3], %s18
      %s20 = sshll.u32 [#allocation2], 4
      %s21 = int_to_ptr.vmem [resolvable:$true] %s20
      %26 = dma.hbm_to_vmem [thread:$0]  %s1, 8192, %s21, [#allocation3], 512, 512, 32
    $region9: #{decoder_mlp.1} parent=1 // pred_fallthru
      _
    // Predicated region
    $region10: #{decoder_mlp.1} parent=1 // pred_check
      _
    $region11: #{decoder_mlp.1} parent=1 // pred_check_branch
      %28 = sbr.rel (0) target = $region13
    $region12: #{decoder_mlp.1} parent=1 // pred_region
      _
    $region13: #{decoder_mlp.1} parent=1 // pred_fallthru
      _
    // Predicated region
    $region14: #{decoder_mlp.1} parent=1 // pred_check
      _
    $region15: #{decoder_mlp.1} parent=1 // pred_check_branch
      %30 = sbr.rel (0) target = $region17
    $region16: #{decoder_mlp.1} parent=1 // pred_region
      %s32 = ssub.s32 8192, 8192
      %33 = vsyncadd [#allocation6], %s32
      %s34 = sshll.u32 [#allocation5], 4
      %s35 = int_to_ptr.vmem [resolvable:$true] %s34
      %40 = dma.hbm_to_vmem [thread:$0]  %s3, 8192, %s35, [#allocation6], 128, 128, 8
    $region17: #{decoder_mlp.1} parent=1 // pred_fallthru
      _
    // Predicated region
    $region18: #{decoder_mlp.1} parent=1 // pred_check
      _
    $region19: #{decoder_mlp.1} parent=1 // pred_check_branch
      %42 = sbr.rel (0) target = $region21
    $region20: #{decoder_mlp.1} parent=1 // pred_region
      _
    $region21: #{decoder_mlp.1} parent=1 // pred_fallthru
      _
    // Predicated region
    $region22: #{decoder_mlp.1} parent=1 // pred_check
      _
    $region23: #{decoder_mlp.1} parent=1 // pred_check_branch
      %44 = sbr.rel (0) target = $region25
    $region24: #{decoder_mlp.1} parent=1 // pred_region
      %45 = dma.done [#allocation3], 8192
    $region25: #{decoder_mlp.1} parent=1 // pred_fallthru
      _
    // Predicated region
    $region26: #{decoder_mlp.1} parent=1 // pred_check
      _
    $region27: #{decoder_mlp.1} parent=1 // pred_check_branch
      %47 = sbr.rel (0) target = $region29
    $region28: #{decoder_mlp.1} parent=1 // pred_region
      %48 = dma.done [#allocation6], 8192
    $region29: #{decoder_mlp.1} parent=1 // pred_fallthru
      _
    %v49 = vld [vmem:[%s0] sm:$0xff]
    %v50 = vld [vmem:[#allocation2] sm:$0xff]
    %v51 = vld [vmem:[#allocation2 + $0x8] sm:$0xff]
    %v52 = vld [vmem:[#allocation2 + $0x10] sm:$0xff]
    %v53 = vld [vmem:[#allocation2 + $0x18] sm:$0xff]
    %v54 = vld [vmem:[#allocation2 + $0x20] sm:$0xff]
    %v55 = vld [vmem:[#allocation2 + $0x28] sm:$0xff]
    %v56 = vld [vmem:[#allocation2 + $0x30] sm:$0xff]
    %v57 = vld [vmem:[#allocation2 + $0x38] sm:$0xff]
    %v58 = vld [vmem:[#allocation2 + $0x40] sm:$0xff]
    %v59 = vld [vmem:[#allocation2 + $0x48] sm:$0xff]
    %v60 = vld [vmem:[#allocation2 + $0x50] sm:$0xff]
    %v61 = vld [vmem:[#allocation2 + $0x58] sm:$0xff]
    %v62 = vld [vmem:[#allocation2 + $0x60] sm:$0xff]
    %v63 = vld [vmem:[#allocation2 + $0x68] sm:$0xff]
    %v64 = vld [vmem:[#allocation2 + $0x70] sm:$0xff]
    %v65 = vld [vmem:[#allocation2 + $0x78] sm:$0xff]
    %v66 = vld [vmem:[#allocation2 + $0x80] sm:$0xff]
    %v67 = vld [vmem:[#allocation2 + $0x88] sm:$0xff]
    %v68 = vld [vmem:[#allocation2 + $0x90] sm:$0xff]
    %v69 = vld [vmem:[#allocation2 + $0x98] sm:$0xff]
    %v70 = vld [vmem:[#allocation2 + $0xa0] sm:$0xff]
    %v71 = vld [vmem:[#allocation2 + $0xa8] sm:$0xff]
    %v72 = vld [vmem:[#allocation2 + $0xb0] sm:$0xff]
    %v73 = vld [vmem:[#allocation2 + $0xb8] sm:$0xff]
    %v74 = vld [vmem:[#allocation2 + $0xc0] sm:$0xff]
    %v75 = vld [vmem:[#allocation2 + $0xc8] sm:$0xff]
    %v76 = vld [vmem:[#allocation2 + $0xd0] sm:$0xff]
    %v77 = vld [vmem:[#allocation2 + $0xd8] sm:$0xff]
    %v78 = vld [vmem:[#allocation2 + $0xe0] sm:$0xff]
    %v79 = vld [vmem:[#allocation2 + $0xe8] sm:$0xff]
    %v80 = vld [vmem:[#allocation2 + $0xf0] sm:$0xff]
    %v81 = vld [vmem:[#allocation2 + $0xf8] sm:$0xff]
    %v82 = vld [vmem:[#allocation2 + $0x100] sm:$0xff]
    %v83 = vld [vmem:[#allocation2 + $0x108] sm:$0xff]
    %v84 = vld [vmem:[#allocation2 + $0x110] sm:$0xff]
    %v85 = vld [vmem:[#allocation2 + $0x118] sm:$0xff]
    %v86 = vld [vmem:[#allocation2 + $0x120] sm:$0xff]
    %v87 = vld [vmem:[#allocation2 + $0x128] sm:$0xff]
    %v88 = vld [vmem:[#allocation2 + $0x130] sm:$0xff]
    %v89 = vld [vmem:[#allocation2 + $0x138] sm:$0xff]
    %v90 = vld [vmem:[#allocation2 + $0x140] sm:$0xff]
    %v91 = vld [vmem:[#allocation2 + $0x148] sm:$0xff]
    %v92 = vld [vmem:[#allocation2 + $0x150] sm:$0xff]
    %v93 = vld [vmem:[#allocation2 + $0x158] sm:$0xff]
    %v94 = vld [vmem:[#allocation2 + $0x160] sm:$0xff]
    %v95 = vld [vmem:[#allocation2 + $0x168] sm:$0xff]
    %v96 = vld [vmem:[#allocation2 + $0x170] sm:$0xff]
    %v97 = vld [vmem:[#allocation2 + $0x178] sm:$0xff]
    %v98 = vld [vmem:[#allocation2 + $0x180] sm:$0xff]
    %v99 = vld [vmem:[#allocation2 + $0x188] sm:$0xff]
    %v100 = vld [vmem:[#allocation2 + $0x190] sm:$0xff]
    %v101 = vld [vmem:[#allocation2 + $0x198] sm:$0xff]
    %v102 = vld [vmem:[#allocation2 + $0x1a0] sm:$0xff]
    %v103 = vld [vmem:[#allocation2 + $0x1a8] sm:$0xff]
    %v104 = vld [vmem:[#allocation2 + $0x1b0] sm:$0xff]
    %v105 = vld [vmem:[#allocation2 + $0x1b8] sm:$0xff]
    %v106 = vld [vmem:[#allocation2 + $0x1c0] sm:$0xff]
    %v107 = vld [vmem:[#allocation2 + $0x1c8] sm:$0xff]
    %v108 = vld [vmem:[#allocation2 + $0x1d0] sm:$0xff]
    %v109 = vld [vmem:[#allocation2 + $0x1d8] sm:$0xff]
    %v110 = vld [vmem:[#allocation2 + $0x1e0] sm:$0xff]
    %v111 = vld [vmem:[#allocation2 + $0x1e8] sm:$0xff]
    %v112 = vld [vmem:[#allocation2 + $0x1f0] sm:$0xff]
    %v113 = vld [vmem:[#allocation2 + $0x1f8] sm:$0xff]
    %v114 = vld [vmem:[%s2] sm:$0xf]
    %v116 = vlaneseq
    %v117 = vshrl.u32 %v116, 7
    %v118 = vsub.s32 0, %v117
    %v119 = vrot.slane %v114, %v118
    %v120 = vlaneseq
    %v121 = vshrl.u32 %v120, 7
    %v122 = vsub.s32 1, %v121
    %v123 = vrot.slane %v114, %v122
    %v124 = vlaneseq
    %v125 = vshrl.u32 %v124, 7
    %v126 = vsub.s32 2, %v125
    %v127 = vrot.slane %v114, %v126
    %v128 = vlaneseq
    %v129 = vshrl.u32 %v128, 7
    %v130 = vsub.s32 3, %v129
    %v131 = vrot.slane %v114, %v130
    %136 = vmatprep.subr.mxu0 %v111
    %137 = vmatpush1.msra.mxu0 %v110
    %138 = vmatprep.subr.mxu0 %v107
    %139 = vmatpush1.msra.mxu0 %v106
    %140 = vmatprep.subr.mxu0 %v103
    %141 = vmatpush1.msra.mxu0 %v102
    %142 = vmatprep.subr.mxu0 %v99
    %143 = vmatpush1.msra.mxu0 %v98
    %144 = vmatprep.subr.mxu0 %v95
    %145 = vmatpush1.msra.mxu0 %v94
    %146 = vmatprep.subr.mxu0 %v91
    %147 = vmatpush1.msra.mxu0 %v90
    %148 = vmatprep.subr.mxu0 %v87
    %149 = vmatpush1.msra.mxu0 %v86
    %150 = vmatprep.subr.mxu0 %v83
    %151 = vmatpush1.msra.mxu0 %v82
    %152 = vmatprep.subr.mxu0 %v79
    %153 = vmatpush1.msra.mxu0 %v78
    %154 = vmatprep.subr.mxu0 %v75
    %155 = vmatpush1.msra.mxu0 %v74
    %156 = vmatprep.subr.mxu0 %v71
    %157 = vmatpush1.msra.mxu0 %v70
    %158 = vmatprep.subr.mxu0 %v67
    %159 = vmatpush1.msra.mxu0 %v66
    %160 = vmatprep.subr.mxu0 %v63
    %161 = vmatpush1.msra.mxu0 %v62
    %162 = vmatprep.subr.mxu0 %v59
    %163 = vmatpush1.msra.mxu0 %v58
    %164 = vmatprep.subr.mxu0 %v55
    %165 = vmatpush1.msra.mxu0 %v54
    %166 = vmatprep.subr.mxu0 %v51
    %167 = vmatpush1.msra.mxu0 %v50
    %168 = vmatprep.subr.mxu0 0.0
    %169 = vmatpush2.msra.mxu0 0.0
    %170 = vmatprep.subr.mxu0 0.0
    %171 = vmatpush2.msra.mxu0 0.0
    %172 = vmatprep.subr.mxu0 0.0
    %173 = vmatpush2.msra.mxu0 0.0
    %174 = vmatprep.subr.mxu0 0.0
    %175 = vmatpush2.msra.mxu0 0.0
    %176 = vmatprep.subr.mxu0 0.0
    %177 = vmatpush2.msra.mxu0 0.0
    %178 = vmatprep.subr.mxu0 0.0
    %179 = vmatpush2.msra.mxu0 0.0
    %180 = vmatprep.subr.mxu0 0.0
    %181 = vmatpush2.msra.mxu0 0.0
    %182 = vmatprep.subr.mxu0 0.0
    %183 = vmatpush2.msra.mxu0 0.0
    %184 = vmatprep.subr.mxu0 0.0
    %185 = vmatpush2.msra.mxu0 0.0
    %186 = vmatprep.subr.mxu0 0.0
    %187 = vmatpush2.msra.mxu0 0.0
    %188 = vmatprep.subr.mxu0 0.0
    %189 = vmatpush2.msra.mxu0 0.0
    %190 = vmatprep.subr.mxu0 0.0
    %191 = vmatpush2.msra.mxu0 0.0
    %192 = vmatprep.subr.mxu0 0.0
    %193 = vmatpush2.msra.mxu0 0.0
    %194 = vmatprep.subr.mxu0 0.0
    %195 = vmatpush2.msra.mxu0 0.0
    %196 = vmatprep.subr.mxu0 0.0
    %197 = vmatpush2.msra.mxu0 0.0
    %198 = vmatprep.subr.mxu0 0.0
    %199 = vmatpush2.msra.mxu0 0.0
    %200 = vmatprep.mubr.f32.mxu0 0.0
    %201 = vmatmul.mubr.f32.gmra.mxu0 %v49
    %v202 = vpop.f32.mrf.mxu0
    %v203 = vadd.f32 %v119, %v202
    %v204 = vpop.f32.mrf.mxu0
    %v205 = vadd.f32 %v123, %v204
    %206 = vdwg.mxu0
    %207 = vmatprep.subr.mxu0 %v113
    %208 = vmatpush1.msra.mxu0 %v112
    %209 = vmatprep.subr.mxu0 %v109
    %210 = vmatpush1.msra.mxu0 %v108
    %211 = vmatprep.subr.mxu0 %v105
    %212 = vmatpush1.msra.mxu0 %v104
    %213 = vmatprep.subr.mxu0 %v101
    %214 = vmatpush1.msra.mxu0 %v100
    %215 = vmatprep.subr.mxu0 %v97
    %216 = vmatpush1.msra.mxu0 %v96
    %217 = vmatprep.subr.mxu0 %v93
    %218 = vmatpush1.msra.mxu0 %v92
    %219 = vmatprep.subr.mxu0 %v89
    %220 = vmatpush1.msra.mxu0 %v88
    %221 = vmatprep.subr.mxu0 %v85
    %222 = vmatpush1.msra.mxu0 %v84
    %223 = vmatprep.subr.mxu0 %v81
    %224 = vmatpush1.msra.mxu0 %v80
    %225 = vmatprep.subr.mxu0 %v77
    %226 = vmatpush1.msra.mxu0 %v76
    %227 = vmatprep.subr.mxu0 %v73
    %228 = vmatpush1.msra.mxu0 %v72
    %229 = vmatprep.subr.mxu0 %v69
    %230 = vmatpush1.msra.mxu0 %v68
    %231 = vmatprep.subr.mxu0 %v65
    %232 = vmatpush1.msra.mxu0 %v64
    %233 = vmatprep.subr.mxu0 %v61
    %234 = vmatpush1.msra.mxu0 %v60
    %235 = vmatprep.subr.mxu0 %v57
    %236 = vmatpush1.msra.mxu0 %v56
    %237 = vmatprep.subr.mxu0 %v53
    %238 = vmatpush1.msra.mxu0 %v52
    %239 = vmatprep.subr.mxu0 0.0
    %240 = vmatpush2.msra.mxu0 0.0
    %241 = vmatprep.subr.mxu0 0.0
    %242 = vmatpush2.msra.mxu0 0.0
    %243 = vmatprep.subr.mxu0 0.0
    %244 = vmatpush2.msra.mxu0 0.0
    %245 = vmatprep.subr.mxu0 0.0
    %246 = vmatpush2.msra.mxu0 0.0
    %247 = vmatprep.subr.mxu0 0.0
    %248 = vmatpush2.msra.mxu0 0.0
    %249 = vmatprep.subr.mxu0 0.0
    %250 = vmatpush2.msra.mxu0 0.0
    %251 = vmatprep.subr.mxu0 0.0
    %252 = vmatpush2.msra.mxu0 0.0
    %253 = vmatprep.subr.mxu0 0.0
    %254 = vmatpush2.msra.mxu0 0.0
    %255 = vmatprep.subr.mxu0 0.0
    %256 = vmatpush2.msra.mxu0 0.0
    %257 = vmatprep.subr.mxu0 0.0
    %258 = vmatpush2.msra.mxu0 0.0
    %259 = vmatprep.subr.mxu0 0.0
    %260 = vmatpush2.msra.mxu0 0.0
    %261 = vmatprep.subr.mxu0 0.0
    %262 = vmatpush2.msra.mxu0 0.0
    %263 = vmatprep.subr.mxu0 0.0
    %264 = vmatpush2.msra.mxu0 0.0
    %265 = vmatprep.subr.mxu0 0.0
    %266 = vmatpush2.msra.mxu0 0.0
    %267 = vmatprep.subr.mxu0 0.0
    %268 = vmatpush2.msra.mxu0 0.0
    %269 = vmatprep.subr.mxu0 0.0
    %270 = vmatpush2.msra.mxu0 0.0
    %271 = vmatprep.mubr.f32.mxu0 0.0
    %272 = vmatmul.mubr.f32.gmra.mxu0 %v49
    %v273 = vpop.f32.mrf.mxu0
    %v274 = vadd.f32 %v127, %v273
    %v275 = vpop.f32.mrf.mxu0
    %v276 = vadd.f32 %v131, %v275
    %277 = vdwg.mxu0
    %v278 = vmax.f32 %v203, 0.0
    %v279 = vmax.f32 %v205, 0.0
    %v280 = vmax.f32 %v274, 0.0
    %v281 = vmax.f32 %v276, 0.0
    %v282 = vld [vmem:[#allocation5] sm:$0xff]
    %v283 = vld [vmem:[#allocation5 + $0x8] sm:$0xff]
    %v284 = vld [vmem:[#allocation5 + $0x10] sm:$0xff]
    %v285 = vld [vmem:[#allocation5 + $0x18] sm:$0xff]
    %v286 = vld [vmem:[#allocation5 + $0x20] sm:$0xff]
    %v287 = vld [vmem:[#allocation5 + $0x28] sm:$0xff]
    %v288 = vld [vmem:[#allocation5 + $0x30] sm:$0xff]
    %v289 = vld [vmem:[#allocation5 + $0x38] sm:$0xff]
    %v290 = vld [vmem:[#allocation5 + $0x40] sm:$0xff]
    %v291 = vld [vmem:[#allocation5 + $0x48] sm:$0xff]
    %v292 = vld [vmem:[#allocation5 + $0x50] sm:$0xff]
    %v293 = vld [vmem:[#allocation5 + $0x58] sm:$0xff]
    %v294 = vld [vmem:[#allocation5 + $0x60] sm:$0xff]
    %v295 = vld [vmem:[#allocation5 + $0x68] sm:$0xff]
    %v296 = vld [vmem:[#allocation5 + $0x70] sm:$0xff]
    %v297 = vld [vmem:[#allocation5 + $0x78] sm:$0xff]
    %v298 = vld [vmem:[#allocation5 + $0x80] sm:$0xff]
    %v299 = vld [vmem:[#allocation5 + $0x88] sm:$0xff]
    %v300 = vld [vmem:[#allocation5 + $0x90] sm:$0xff]
    %v301 = vld [vmem:[#allocation5 + $0x98] sm:$0xff]
    %v302 = vld [vmem:[#allocation5 + $0xa0] sm:$0xff]
    %v303 = vld [vmem:[#allocation5 + $0xa8] sm:$0xff]
    %v304 = vld [vmem:[#allocation5 + $0xb0] sm:$0xff]
    %v305 = vld [vmem:[#allocation5 + $0xb8] sm:$0xff]
    %v306 = vld [vmem:[#allocation5 + $0xc0] sm:$0xff]
    %v307 = vld [vmem:[#allocation5 + $0xc8] sm:$0xff]
    %v308 = vld [vmem:[#allocation5 + $0xd0] sm:$0xff]
    %v309 = vld [vmem:[#allocation5 + $0xd8] sm:$0xff]
    %v310 = vld [vmem:[#allocation5 + $0xe0] sm:$0xff]
    %v311 = vld [vmem:[#allocation5 + $0xe8] sm:$0xff]
    %v312 = vld [vmem:[#allocation5 + $0xf0] sm:$0xff]
    %v313 = vld [vmem:[#allocation5 + $0xf8] sm:$0xff]
    %v314 = vld [vmem:[#allocation5 + $0x100] sm:$0xff]
    %v315 = vld [vmem:[#allocation5 + $0x108] sm:$0xff]
    %v316 = vld [vmem:[#allocation5 + $0x110] sm:$0xff]
    %v317 = vld [vmem:[#allocation5 + $0x118] sm:$0xff]
    %v318 = vld [vmem:[#allocation5 + $0x120] sm:$0xff]
    %v319 = vld [vmem:[#allocation5 + $0x128] sm:$0xff]
    %v320 = vld [vmem:[#allocation5 + $0x130] sm:$0xff]
    %v321 = vld [vmem:[#allocation5 + $0x138] sm:$0xff]
    %v322 = vld [vmem:[#allocation5 + $0x140] sm:$0xff]
    %v323 = vld [vmem:[#allocation5 + $0x148] sm:$0xff]
    %v324 = vld [vmem:[#allocation5 + $0x150] sm:$0xff]
    %v325 = vld [vmem:[#allocation5 + $0x158] sm:$0xff]
    %v326 = vld [vmem:[#allocation5 + $0x160] sm:$0xff]
    %v327 = vld [vmem:[#allocation5 + $0x168] sm:$0xff]
    %v328 = vld [vmem:[#allocation5 + $0x170] sm:$0xff]
    %v329 = vld [vmem:[#allocation5 + $0x178] sm:$0xff]
    %v330 = vld [vmem:[#allocation5 + $0x180] sm:$0xff]
    %v331 = vld [vmem:[#allocation5 + $0x188] sm:$0xff]
    %v332 = vld [vmem:[#allocation5 + $0x190] sm:$0xff]
    %v333 = vld [vmem:[#allocation5 + $0x198] sm:$0xff]
    %v334 = vld [vmem:[#allocation5 + $0x1a0] sm:$0xff]
    %v335 = vld [vmem:[#allocation5 + $0x1a8] sm:$0xff]
    %v336 = vld [vmem:[#allocation5 + $0x1b0] sm:$0xff]
    %v337 = vld [vmem:[#allocation5 + $0x1b8] sm:$0xff]
    %v338 = vld [vmem:[#allocation5 + $0x1c0] sm:$0xff]
    %v339 = vld [vmem:[#allocation5 + $0x1c8] sm:$0xff]
    %v340 = vld [vmem:[#allocation5 + $0x1d0] sm:$0xff]
    %v341 = vld [vmem:[#allocation5 + $0x1d8] sm:$0xff]
    %v342 = vld [vmem:[#allocation5 + $0x1e0] sm:$0xff]
    %v343 = vld [vmem:[#allocation5 + $0x1e8] sm:$0xff]
    %v344 = vld [vmem:[#allocation5 + $0x1f0] sm:$0xff]
    %v345 = vld [vmem:[#allocation5 + $0x1f8] sm:$0xff]
    %v346 = vld [vmem:[%s4] sm:$0x1]
    %v348 = vlaneseq
    %v349 = vshrl.u32 %v348, 7
    %v350 = vsub.s32 0, %v349
    %v351 = vrot.slane %v346, %v350
    %353 = vmatprep.subr.mxu0 0.0
    %354 = vmatpush1.msra.mxu0 %v297
    %355 = vmatprep.subr.mxu0 0.0
    %356 = vmatpush1.msra.mxu0 %v296
    %357 = vmatprep.subr.mxu0 0.0
    %358 = vmatpush1.msra.mxu0 %v295
    %359 = vmatprep.subr.mxu0 0.0
    %360 = vmatpush1.msra.mxu0 %v294
    %361 = vmatprep.subr.mxu0 0.0
    %362 = vmatpush1.msra.mxu0 %v293
    %363 = vmatprep.subr.mxu0 0.0
    %364 = vmatpush1.msra.mxu0 %v292
    %365 = vmatprep.subr.mxu0 0.0
    %366 = vmatpush1.msra.mxu0 %v291
    %367 = vmatprep.subr.mxu0 0.0
    %368 = vmatpush1.msra.mxu0 %v290
    %369 = vmatprep.subr.mxu0 0.0
    %370 = vmatpush1.msra.mxu0 %v289
    %371 = vmatprep.subr.mxu0 0.0
    %372 = vmatpush1.msra.mxu0 %v288
    %373 = vmatprep.subr.mxu0 0.0
    %374 = vmatpush1.msra.mxu0 %v287
    %375 = vmatprep.subr.mxu0 0.0
    %376 = vmatpush1.msra.mxu0 %v286
    %377 = vmatprep.subr.mxu0 0.0
    %378 = vmatpush1.msra.mxu0 %v285
    %379 = vmatprep.subr.mxu0 0.0
    %380 = vmatpush1.msra.mxu0 %v284
    %381 = vmatprep.subr.mxu0 0.0
    %382 = vmatpush1.msra.mxu0 %v283
    %383 = vmatprep.subr.mxu0 0.0
    %384 = vmatpush1.msra.mxu0 %v282
    %385 = vmatprep.subr.mxu0 0.0
    %386 = vmatpush2.msra.mxu0 %v313
    %387 = vmatprep.subr.mxu0 0.0
    %388 = vmatpush2.msra.mxu0 %v312
    %389 = vmatprep.subr.mxu0 0.0
    %390 = vmatpush2.msra.mxu0 %v311
    %391 = vmatprep.subr.mxu0 0.0
    %392 = vmatpush2.msra.mxu0 %v310
    %393 = vmatprep.subr.mxu0 0.0
    %394 = vmatpush2.msra.mxu0 %v309
    %395 = vmatprep.subr.mxu0 0.0
    %396 = vmatpush2.msra.mxu0 %v308
    %397 = vmatprep.subr.mxu0 0.0
    %398 = vmatpush2.msra.mxu0 %v307
    %399 = vmatprep.subr.mxu0 0.0
    %400 = vmatpush2.msra.mxu0 %v306
    %401 = vmatprep.subr.mxu0 0.0
    %402 = vmatpush2.msra.mxu0 %v305
    %403 = vmatprep.subr.mxu0 0.0
    %404 = vmatpush2.msra.mxu0 %v304
    %405 = vmatprep.subr.mxu0 0.0
    %406 = vmatpush2.msra.mxu0 %v303
    %407 = vmatprep.subr.mxu0 0.0
    %408 = vmatpush2.msra.mxu0 %v302
    %409 = vmatprep.subr.mxu0 0.0
    %410 = vmatpush2.msra.mxu0 %v301
    %411 = vmatprep.subr.mxu0 0.0
    %412 = vmatpush2.msra.mxu0 %v300
    %413 = vmatprep.subr.mxu0 0.0
    %414 = vmatpush2.msra.mxu0 %v299
    %415 = vmatprep.subr.mxu0 0.0
    %416 = vmatpush2.msra.mxu0 %v298
    %417 = vmatprep.mubr.f32.mxu0 %v279
    %418 = vmatmul.mubr.f32.gmra.mxu0 %v278
    %v419 = vpop.f32.mrf.mxu0
    %v420 = vadd.f32 %v351, %v419
    %v421 = vpop.f32.mrf.mxu0
    %422 = vdwg.mxu0
    %423 = vmatprep.subr.mxu0 0.0
    %424 = vmatpush1.msra.mxu0 %v329
    %425 = vmatprep.subr.mxu0 0.0
    %426 = vmatpush1.msra.mxu0 %v328
    %427 = vmatprep.subr.mxu0 0.0
    %428 = vmatpush1.msra.mxu0 %v327
    %429 = vmatprep.subr.mxu0 0.0
    %430 = vmatpush1.msra.mxu0 %v326
    %431 = vmatprep.subr.mxu0 0.0
    %432 = vmatpush1.msra.mxu0 %v325
    %433 = vmatprep.subr.mxu0 0.0
    %434 = vmatpush1.msra.mxu0 %v324
    %435 = vmatprep.subr.mxu0 0.0
    %436 = vmatpush1.msra.mxu0 %v323
    %437 = vmatprep.subr.mxu0 0.0
    %438 = vmatpush1.msra.mxu0 %v322
    %439 = vmatprep.subr.mxu0 0.0
    %440 = vmatpush1.msra.mxu0 %v321
    %441 = vmatprep.subr.mxu0 0.0
    %442 = vmatpush1.msra.mxu0 %v320
    %443 = vmatprep.subr.mxu0 0.0
    %444 = vmatpush1.msra.mxu0 %v319
    %445 = vmatprep.subr.mxu0 0.0
    %446 = vmatpush1.msra.mxu0 %v318
    %447 = vmatprep.subr.mxu0 0.0
    %448 = vmatpush1.msra.mxu0 %v317
    %449 = vmatprep.subr.mxu0 0.0
    %450 = vmatpush1.msra.mxu0 %v316
    %451 = vmatprep.subr.mxu0 0.0
    %452 = vmatpush1.msra.mxu0 %v315
    %453 = vmatprep.subr.mxu0 0.0
    %454 = vmatpush1.msra.mxu0 %v314
    %455 = vmatprep.subr.mxu0 0.0
    %456 = vmatpush2.msra.mxu0 %v345
    %457 = vmatprep.subr.mxu0 0.0
    %458 = vmatpush2.msra.mxu0 %v344
    %459 = vmatprep.subr.mxu0 0.0
    %460 = vmatpush2.msra.mxu0 %v343
    %461 = vmatprep.subr.mxu0 0.0
    %462 = vmatpush2.msra.mxu0 %v342
    %463 = vmatprep.subr.mxu0 0.0
    %464 = vmatpush2.msra.mxu0 %v341
    %465 = vmatprep.subr.mxu0 0.0
    %466 = vmatpush2.msra.mxu0 %v340
    %467 = vmatprep.subr.mxu0 0.0
    %468 = vmatpush2.msra.mxu0 %v339
    %469 = vmatprep.subr.mxu0 0.0
    %470 = vmatpush2.msra.mxu0 %v338
    %471 = vmatprep.subr.mxu0 0.0
    %472 = vmatpush2.msra.mxu0 %v337
    %473 = vmatprep.subr.mxu0 0.0
    %474 = vmatpush2.msra.mxu0 %v336
    %475 = vmatprep.subr.mxu0 0.0
    %476 = vmatpush2.msra.mxu0 %v335
    %477 = vmatprep.subr.mxu0 0.0
    %478 = vmatpush2.msra.mxu0 %v334
    %479 = vmatprep.subr.mxu0 0.0
    %480 = vmatpush2.msra.mxu0 %v333
    %481 = vmatprep.subr.mxu0 0.0
    %482 = vmatpush2.msra.mxu0 %v332
    %483 = vmatprep.subr.mxu0 0.0
    %484 = vmatpush2.msra.mxu0 %v331
    %485 = vmatprep.subr.mxu0 0.0
    %486 = vmatpush2.msra.mxu0 %v330
    %487 = vmatprep.mubr.f32.mxu0 %v281
    %488 = vmatmul.mubr.f32.gmra.mxu0 %v280
    %v489 = vpop.f32.mrf.mxu0
    %v490 = vadd.f32 %v420, %v489
    %v491 = vpop.f32.mrf.mxu0
    %492 = vdwg.mxu0
    %v493 = vmax.f32 %v490, 0.0
    %494 = vst [vmem:[#allocation7] sm:$0xff] %v493
    // Predicated region
    $region30: #{decoder_mlp.1} parent=1 // pred_check
      _
    $region31: #{decoder_mlp.1} parent=1 // pred_check_branch
      %496 = sbr.rel (0) target = $region33
    $region32: #{decoder_mlp.1} parent=1 // pred_region
      %s498 = ssub.s32 128, 128
      %499 = vsyncadd [#allocation4], %s498
      %s501 = sshll.u32 [#allocation7], 4
      %s502 = int_to_ptr.vmem [resolvable:$true] %s501
      %504 = dma.vmem_to_hbm [thread:$0]  %s502, 128, %s5, [#allocation4]
    $region33: #{decoder_mlp.1} parent=1 // pred_fallthru
      _
    // Predicated region
    $region34: #{decoder_mlp.1} parent=1 // pred_check
      _
    $region35: #{decoder_mlp.1} parent=1 // pred_check_branch
      %506 = sbr.rel (0) target = $region37
    $region36: #{decoder_mlp.1} parent=1 // pred_region
      %507 = dma.done [#allocation4], 128
    $region37: #{decoder_mlp.1} parent=1 // pred_fallthru
      _
    %508 = vsyncpa [#allocation3], 1
    %509 = vsyncpa [#allocation6], 1
    %510 = vsyncpa [#allocation4], 1

</llo_original>
